<compile_context>
chip_gen: v7x
topology: tpu7x:2x2x1
jax: 0.10.0
libtpu: 0.0.40
codegen_flags: <defaults>
</compile_context>

<pallas_src>
import jax
import jax.numpy as jnp
from jax.experimental import pallas as pl
from jax.experimental.pallas import tpu as pltpu


def _meanmax_kernel(h_ref, m_ref, o_ref, sum_acc, max_acc, cnt_acc):
    # h_ref:   (TB, TS, H) native dtype  -- one tile of hidden states
    # m_ref:   (TB, TS)    mask (int)    -- matching tile of the attention mask
    # o_ref:   (TB, 2*H)   output slab   -- [:, :H] = mean, [:, H:] = max
    # scratch: f32 running accumulators, resident across the seq grid axis
    s_idx = pl.program_id(1)

    @pl.when(s_idx == 0)
    def _init():
        sum_acc[...] = jnp.zeros_like(sum_acc)
        cnt_acc[...] = jnp.zeros_like(cnt_acc)
        max_acc[...] = jnp.full_like(max_acc, -jnp.inf)

    h = h_ref[...].astype(jnp.float32)           # f32 compute/accumulate
    m = m_ref[...].astype(jnp.float32)           # (TB, TS)
    m3 = m[:, :, None]                           # (TB, TS, 1)

    # masked sum + valid-token count (mean numerator / denominator)
    sum_acc[...] += jnp.sum(h * m3, axis=1)                    # (TB, H)
    cnt_acc[...] += jnp.sum(m, axis=1, keepdims=True)          # (TB, 1)

    # masked max: masked positions pinned to -10000.0 (torch semantics)
    h_masked = jnp.where(m3 == 0.0, jnp.float32(-10000.0), h)
    max_acc[...] = jnp.maximum(max_acc[...], jnp.max(h_masked, axis=1))

    @pl.when(s_idx == pl.num_programs(1) - 1)
    def _finalize():
        hdim = sum_acc.shape[-1]
        mean = sum_acc[...] / jnp.maximum(cnt_acc[...], 1e-9)  # (TB, H)
        o_ref[:, :hdim] = mean.astype(o_ref.dtype)
        o_ref[:, hdim:] = max_acc[...].astype(o_ref.dtype)


def _choose_tiles(B, S, H, h_itemsize, block_budget_bytes):
    """Pick (TB, TS) that keep every BlockSpec layout-legal and fit the budget.

    Legality: hidden block (TB, TS, H) needs TS % 8 == 0 or TS == S; the 2-D
    mask (TB, TS) / output (TB, 2H) blocks need TB % 8 == 0 or TB == B and
    TS % 128 == 0 or TS == S (H / 2H are always the full last dim).
    """
    ts_cands = sorted({S} | {t for t in range(128, S, 128) if S % t == 0})
    tb_cands = sorted({B} | {t for t in range(8, B, 8) if B % t == 0})

    best = None
    for tb in tb_cands:
        for ts in ts_cands:
            blk = tb * ts * H * h_itemsize
            if blk <= block_budget_bytes and (best is None or blk > best[0]):
                best = (blk, tb, ts)
    if best is not None:
        return best[1], best[2]
    # Nothing fits the budget: smallest legal block; vmem_limit_bytes absorbs it.
    return min(tb_cands), min(ts_cands)


def mean_max_pooling(last_hidden_state, attention_mask,
                     *, block_budget_bytes=4 * 1024 * 1024):
    """last_hidden_state: [B, S, H] (any float dtype); attention_mask: [B, S] 0/1.

    Returns [B, 2*H] = concat([masked mean, masked max], axis=1) in the input dtype.
    """
    B, S, H = last_hidden_state.shape
    assert attention_mask.shape == (B, S), attention_mask.shape

    h = last_hidden_state            # keep native dtype (no extra HBM copy)
    m = attention_mask               # narrow dtype; cast to f32 in-kernel
    out_dtype = last_hidden_state.dtype

    TB, TS = _choose_tiles(B, S, H, h.dtype.itemsize, block_budget_bytes)
    grid = (B // TB, S // TS)

    # Explicit VMEM budget: double-buffered inputs + output block + scratch.
    def _rup(x, n):
        return (x + n - 1) // n * n

    h_blk = TB * TS * H * h.dtype.itemsize
    m_blk = _rup(TB, 8) * _rup(TS, 128) * m.dtype.itemsize
    o_blk = _rup(TB, 8) * _rup(2 * H, 128) * jnp.dtype(out_dtype).itemsize
    scratch_bytes = (2 * _rup(TB, 8) * _rup(H, 128) + _rup(TB, 8) * 128) * 4
    vmem_bytes = 2 * (h_blk + m_blk) + 2 * o_blk + scratch_bytes
    vmem_limit = int(min(64 * 1024 * 1024, max(32 * 1024 * 1024, 2 * vmem_bytes)))

    out = pl.pallas_call(
        _meanmax_kernel,
        out_shape=jax.ShapeDtypeStruct((B, 2 * H), out_dtype),
        grid_spec=pltpu.PrefetchScalarGridSpec(
            num_scalar_prefetch=0,
            grid=grid,
            in_specs=[
                pl.BlockSpec((TB, TS, H), lambda b, s: (b, s, 0)),
                pl.BlockSpec((TB, TS), lambda b, s: (b, s)),
            ],
            out_specs=pl.BlockSpec((TB, 2 * H), lambda b, s: (b, 0)),
            scratch_shapes=[
                pltpu.VMEM((TB, H), jnp.float32),   # running masked sum
                pltpu.VMEM((TB, H), jnp.float32),   # running masked max
                pltpu.VMEM((TB, 1), jnp.float32),   # running valid-token count
            ],
        ),
        compiler_params=pltpu.CompilerParams(
            dimension_semantics=("parallel", "arbitrary"),
            vmem_limit_bytes=vmem_limit,
        ),
    )(h, m)
    return out


def _reference(h, mask):
    mf = mask.astype(jnp.float32)[..., None]
    hf = h.astype(jnp.float32)
    mean = jnp.sum(hf * mf, axis=1) / jnp.maximum(jnp.sum(mf, axis=1), 1e-9)
    mx = jnp.max(jnp.where(mf == 0.0, -10000.0, hf), axis=1)
    return jnp.concatenate([mean, mx], axis=1)


if __name__ == "__main__":
    key = jax.random.PRNGKey(0)

    # ---- primary example: B=2, S=8, H=32, f32 ----
    B, S, H = 2, 8, 32
    k_h, k_m = jax.random.split(key)
    last_hidden_state = jax.random.normal(k_h, (B, S, H), dtype=jnp.float32)
    attention_mask = jnp.array([[1] * S, [1] * (S - 3) + [0] * 3], dtype=jnp.int32)

    y = mean_max_pooling(last_hidden_state, attention_mask)
    jax.block_until_ready(y)
    ref = _reference(last_hidden_state, attention_mask)
    assert y.shape == (B, 2 * H), y.shape
    assert jnp.allclose(y, ref, atol=1e-5, rtol=1e-5), "f32 mismatch vs reference"

    # ---- bf16 input path (native dtype into the kernel, f32 accumulate) ----
    h_bf16 = last_hidden_state.astype(jnp.bfloat16)
    y_bf16 = mean_max_pooling(h_bf16, attention_mask)
    jax.block_until_ready(y_bf16)
    ref_bf16 = _reference(h_bf16, attention_mask)
    assert jnp.allclose(y_bf16.astype(jnp.float32), ref_bf16, atol=2e-2, rtol=2e-2), \
        "bf16 mismatch vs reference"

    # ---- multi-tile grid (forces TB/TS tiling + seq-axis accumulation) ----
    B2, S2, H2 = 16, 256, 128
    k_h2, k_m2 = jax.random.split(k_m)
    h2 = jax.random.normal(k_h2, (B2, S2, H2), dtype=jnp.float32)
    lens = jax.random.randint(k_m2, (B2,), 1, S2 + 1)
    mask2 = (jnp.arange(S2)[None, :] < lens[:, None]).astype(jnp.int32)
    y2 = mean_max_pooling(h2, mask2, block_budget_bytes=256 * 1024)  # force grid (2, 2)
    jax.block_until_ready(y2)
    ref2 = _reference(h2, mask2)
    assert jnp.allclose(y2, ref2, atol=1e-4, rtol=1e-4), "tiled mismatch vs reference"

    print("KERNEL_OK")
</pallas_src>

<mosaic_0001>
module attributes {stable_mosaic.version = 11 : i64} {
  func.func @_meanmax_kernel(%arg0: i32, %arg1: i32, %arg2: memref<2x8x32xf32, #tpu.memory_space<vmem>>, %arg3: memref<2x8xi32, #tpu.memory_space<vmem>>, %arg4: memref<2x64xf32, #tpu.memory_space<vmem>>, %arg5: memref<2x32xf32, #tpu.memory_space<vmem>>, %arg6: memref<2x32xf32, #tpu.memory_space<vmem>>, %arg7: memref<2x1xf32, #tpu.memory_space<vmem>>) attributes {dimension_semantics = [#tpu.dimension_semantics<parallel>, #tpu.dimension_semantics<arbitrary>], iteration_bounds = array<i64: 1, 1>, scalar_prefetch = 0 : i64, scratch_operands = 3 : i64, tpu.core_type = #tpu.core_type<tc>, window_params = [{transform_indices = @transform_0, window_bounds = array<i64: 2, 8, 32>}, {transform_indices = @transform_1, window_bounds = array<i64: 2, 8>}, {transform_indices = @transform_2, window_bounds = array<i64: 2, 64>}]} {
    %c0_i32 = arith.constant 0 : i32
    %0 = arith.cmpi eq, %arg1, %c0_i32 : i32
    %1 = arith.extui %0 : i1 to i32
    %c0_i32_0 = arith.constant 0 : i32
    %2 = arith.cmpi ne, %1, %c0_i32_0 : i32
    scf.if %2 {
      %cst_23 = arith.constant 0.000000e+00 : f32
      %31 = vector.broadcast %cst_23 : f32 to vector<2x32xf32>
      %c0_24 = arith.constant 0 : index
      %c0_25 = arith.constant 0 : index
      %32 = vector.load %arg5[%c0_24, %c0_25] : memref<2x32xf32, #tpu.memory_space<vmem>>, vector<2x32xf32>
      tpu.vector_store %arg5[%c0_24, %c0_25], %31 {strides = array<i32>} : memref<2x32xf32, #tpu.memory_space<vmem>>, vector<2x32xf32>,
      %cst_26 = arith.constant 0.000000e+00 : f32
      %33 = vector.broadcast %cst_26 : f32 to vector<2x1xf32>
      %c0_27 = arith.constant 0 : index
      %c0_28 = arith.constant 0 : index
      %34 = vector.load %arg7[%c0_27, %c0_28] : memref<2x1xf32, #tpu.memory_space<vmem>>, vector<2x1xf32>
      tpu.vector_store %arg7[%c0_27, %c0_28], %33 {strides = array<i32>} : memref<2x1xf32, #tpu.memory_space<vmem>>, vector<2x1xf32>,
      %cst_29 = arith.constant 0xFF800000 : f32
      %35 = vector.broadcast %cst_29 : f32 to vector<2x32xf32>
      %c0_30 = arith.constant 0 : index
      %c0_31 = arith.constant 0 : index
      %36 = vector.load %arg6[%c0_30, %c0_31] : memref<2x32xf32, #tpu.memory_space<vmem>>, vector<2x32xf32>
      tpu.vector_store %arg6[%c0_30, %c0_31], %35 {strides = array<i32>} : memref<2x32xf32, #tpu.memory_space<vmem>>, vector<2x32xf32>,
    } else {
    }
    %c0 = arith.constant 0 : index
    %c0_1 = arith.constant 0 : index
    %c0_2 = arith.constant 0 : index
    %3 = vector.load %arg2[%c0, %c0_1, %c0_2] : memref<2x8x32xf32, #tpu.memory_space<vmem>>, vector<2x8x32xf32>
    %c0_3 = arith.constant 0 : index
    %c0_4 = arith.constant 0 : index
    %4 = vector.load %arg3[%c0_3, %c0_4] : memref<2x8xi32, #tpu.memory_space<vmem>>, vector<2x8xi32>
    %5 = arith.sitofp %4 : vector<2x8xi32> to vector<2x8xf32>
    %6 = vector.shape_cast %5 : vector<2x8xf32> to vector<2x8x1xf32>
    %c0_5 = arith.constant 0 : index
    %c0_6 = arith.constant 0 : index
    %7 = vector.load %arg5[%c0_5, %c0_6] : memref<2x32xf32, #tpu.memory_space<vmem>>, vector<2x32xf32>
    %8 = vector.broadcast %6 : vector<2x8x1xf32> to vector<2x8x32xf32>
    %9 = arith.mulf %3, %8 : vector<2x8x32xf32>
    %cst = arith.constant dense<0.000000e+00> : vector<2x32xf32>
    %10 = vector.multi_reduction <add>, %9, %cst [1] : vector<2x8x32xf32> to vector<2x32xf32>
    %11 = arith.addf %7, %10 : vector<2x32xf32>
    %c0_7 = arith.constant 0 : index
    %c0_8 = arith.constant 0 : index
    %12 = vector.load %arg5[%c0_7, %c0_8] : memref<2x32xf32, #tpu.memory_space<vmem>>, vector<2x32xf32>
    tpu.vector_store %arg5[%c0_7, %c0_8], %11 {strides = array<i32>} : memref<2x32xf32, #tpu.memory_space<vmem>>, vector<2x32xf32>,
    %c0_9 = arith.constant 0 : index
    %c0_10 = arith.constant 0 : index
    %13 = vector.load %arg7[%c0_9, %c0_10] : memref<2x1xf32, #tpu.memory_space<vmem>>, vector<2x1xf32>
    %cst_11 = arith.constant dense<0.000000e+00> : vector<2xf32>
    %14 = vector.multi_reduction <add>, %5, %cst_11 [1] : vector<2x8xf32> to vector<2xf32>
    %15 = vector.shape_cast %14 : vector<2xf32> to vector<2x1xf32>
    %16 = arith.addf %13, %15 : vector<2x1xf32>
    %c0_12 = arith.constant 0 : index
    %c0_13 = arith.constant 0 : index
    %17 = vector.load %arg7[%c0_12, %c0_13] : memref<2x1xf32, #tpu.memory_space<vmem>>, vector<2x1xf32>
    tpu.vector_store %arg7[%c0_12, %c0_13], %16 {strides = array<i32>} : memref<2x1xf32, #tpu.memory_space<vmem>>, vector<2x1xf32>,
    %cst_14 = arith.constant 0.000000e+00 : f32
    %18 = vector.broadcast %cst_14 : f32 to vector<2x8x1xf32>
    %19 = arith.cmpf oeq, %6, %18 : vector<2x8x1xf32>
    %cst_15 = arith.constant -1.000000e+04 : f32
    %20 = vector.shape_cast %19 : vector<2x8x1xi1> to vector<2x8x1xi1>
    %21 = vector.broadcast %20 : vector<2x8x1xi1> to vector<2x8x32xi1>
    %22 = vector.broadcast %cst_15 : f32 to vector<2x8x32xf32>
    %23 = arith.select %21, %22, %3 : vector<2x8x32xi1>, vector<2x8x32xf32>
    %c0_16 = arith.constant 0 : index
    %c0_17 = arith.constant 0 : index
    %24 = vector.load %arg6[%c0_16, %c0_17] : memref<2x32xf32, #tpu.memory_space<vmem>>, vector<2x32xf32>
    %cst_18 = arith.constant dense<0xFF800000> : vector<2x32xf32>
    %25 = vector.multi_reduction <maximumf>, %23, %cst_18 [1] : vector<2x8x32xf32> to vector<2x32xf32>
    %26 = arith.maximumf %24, %25 : vector<2x32xf32>
    %c0_19 = arith.constant 0 : index
    %c0_20 = arith.constant 0 : index
    %27 = vector.load %arg6[%c0_19, %c0_20] : memref<2x32xf32, #tpu.memory_space<vmem>>, vector<2x32xf32>
    tpu.vector_store %arg6[%c0_19, %c0_20], %26 {strides = array<i32>} : memref<2x32xf32, #tpu.memory_space<vmem>>, vector<2x32xf32>,
    %c0_i32_21 = arith.constant 0 : i32
    %28 = arith.cmpi eq, %arg1, %c0_i32_21 : i32
    %29 = arith.extui %28 : i1 to i32
    %c0_i32_22 = arith.constant 0 : i32
    %30 = arith.cmpi ne, %29, %c0_i32_22 : i32
    scf.if %30 {
      %c0_23 = arith.constant 0 : index
      %c0_24 = arith.constant 0 : index
      %31 = vector.load %arg5[%c0_23, %c0_24] : memref<2x32xf32, #tpu.memory_space<vmem>>, vector<2x32xf32>
      %c0_25 = arith.constant 0 : index
      %c0_26 = arith.constant 0 : index
      %32 = vector.load %arg7[%c0_25, %c0_26] : memref<2x1xf32, #tpu.memory_space<vmem>>, vector<2x1xf32>
      %cst_27 = arith.constant 9.99999971E-10 : f32
      %33 = vector.broadcast %cst_27 : f32 to vector<2x1xf32>
      %34 = arith.maximumf %32, %33 : vector<2x1xf32>
      %35 = vector.broadcast %34 : vector<2x1xf32> to vector<2x32xf32>
      %36 = arith.divf %31, %35 : vector<2x32xf32>
      %c0_28 = arith.constant 0 : index
      %c0_29 = arith.constant 0 : index
      %37 = vector.load %arg4[%c0_28, %c0_29] : memref<2x64xf32, #tpu.memory_space<vmem>>, vector<2x32xf32>
      tpu.vector_store %arg4[%c0_28, %c0_29], %36 {strides = array<i32>} : memref<2x64xf32, #tpu.memory_space<vmem>>, vector<2x32xf32>,
      %c0_30 = arith.constant 0 : index
      %c0_31 = arith.constant 0 : index
      %38 = vector.load %arg6[%c0_30, %c0_31] : memref<2x32xf32, #tpu.memory_space<vmem>>, vector<2x32xf32>
      %c0_32 = arith.constant 0 : index
      %c32 = arith.constant 32 : index
      %39 = vector.load %arg4[%c0_32, %c32] : memref<2x64xf32, #tpu.memory_space<vmem>>, vector<2x32xf32>
      tpu.vector_store %arg4[%c0_32, %c32], %38 {strides = array<i32>} : memref<2x64xf32, #tpu.memory_space<vmem>>, vector<2x32xf32>,
    } else {
    }
    return
  }
  func.func @transform_0(%arg0: i32, %arg1: i32) -> (i32, i32, i32) {
    %c0_i32 = arith.constant 0 : i32
    %c0_i32_0 = arith.constant 0 : i32
    return %arg0, %arg1, %c0_i32 : i32, i32, i32
  }
  func.func @transform_1(%arg0: i32, %arg1: i32) -> (i32, i32) {
    %c0_i32 = arith.constant 0 : i32
    return %arg0, %arg1 : i32, i32
  }
  func.func @transform_2(%arg0: i32, %arg1: i32) -> (i32, i32) {
    %c0_i32 = arith.constant 0 : i32
    %c0_i32_0 = arith.constant 0 : i32
    return %arg0, %c0_i32 : i32, i32
  }
}

</mosaic_0001>

<llo_original>
// kernel: tpu_custom_call.1
$region0: #{tpu_custom_call.1}
  #allocation0 [shape = 'u32[]', space=smem, size = 0x4, offset = 0x4, fixed_abs, tag = 'smem constant byte address 0x4 - core index']
  #allocation1 [shape = 'u32[144,128]{1,0:T(1,128)}', space=vmem, size = 0x12000, scoped, tag = 'internal scratch']
  #allocation2 [shape = 'f32[2,32]{1,0:T(2,128)}', space=vmem, size = 0x400, scoped, tag = 'scratch operand']
  #allocation3 [shape = 'f32[2,32]{1,0:T(2,128)}', space=vmem, size = 0x400, scoped, tag = 'scratch operand']
  #allocation4 [shape = 'f32[2,1]{1,0:T(2,128)}', space=vmem, size = 0x400, scoped, tag = 'scratch operand']
  %s0 = inlined_call_operand.hbm [shape: f32[2,8,32], index: 0, kind: input, shape index: {}]
  %s1 = inlined_call_operand.vmem [shape: s32[2,8], index: 1, kind: input, shape index: {}]
  %s2 = inlined_call_operand.hbm [shape: f32[2,64], index: 2, kind: output, shape index: {}]
  %s3 = sld [smem:[#allocation0]]
  $region30: #{tpu_custom_call.1} parent=0
    _
  %s5 = ssub.s32 1, %s3
  %s6 = scalar_select 0, %s5, %s3
  $region1: #{tpu_custom_call.1} parent=0
    #allocation5 [shape = 'u8[8192]{0}', space=vmem, size = 0x2000, scoped, tag = 'input window, operand 0, single buffered']
    #allocation6 [shape = 's32[1]{0}', space=sflag, size = 0x4, scoped, tag = 'scoped memory for tpu_custom_call.1']
    #allocation7 [shape = 's32[1]{0}', space=sflag, size = 0x4, scoped, tag = 'scoped memory for tpu_custom_call.1']
    #allocation8 [shape = 'u8[1024]{0}', space=vmem, size = 0x400, scoped, tag = 'output window, operand 0, single buffered']
    %7 = vsyncpa [#allocation6], 0
    %8 = vsyncpa [#allocation7], 0
    // Predicated region
    $region2: #{tpu_custom_call.1} parent=1 // pred_check
      _
    $region3: #{tpu_custom_call.1} parent=1 // pred_check_branch
      %10 = sbr.rel (0) target = $region5
    $region4: #{tpu_custom_call.1} parent=1 // pred_region
      %s12 = ssub.s32 256, 256
      %13 = vsyncadd [#allocation6], %s12
      %s14 = sshll.u32 [#allocation5], 4
      %s15 = int_to_ptr.vmem [resolvable:$true] %s14
      %20 = dma.hbm_to_vmem [thread:$0]  %s0, 256, %s15, [#allocation6], 128, 128, 8
    $region5: #{tpu_custom_call.1} parent=1 // pred_fallthru
      _
    // Predicated region
    $region6: #{tpu_custom_call.1} parent=1 // pred_check
      _
    $region7: #{tpu_custom_call.1} parent=1 // pred_check_branch
      %22 = sbr.rel (0) target = $region9
    $region8: #{tpu_custom_call.1} parent=1 // pred_region
      _
    $region9: #{tpu_custom_call.1} parent=1 // pred_fallthru
      _
    // Predicated region
    $region10: #{tpu_custom_call.1} parent=1 // pred_check
      _
    $region11: #{tpu_custom_call.1} parent=1 // pred_check_branch
      %24 = sbr.rel (0) target = $region13
    $region12: #{tpu_custom_call.1} parent=1 // pred_region
      %25 = dma.done [#allocation6], 256
    $region13: #{tpu_custom_call.1} parent=1 // pred_fallthru
      _
    %p26 = scmp.eq.s32.totalorder 0, 0
    // Predicated region
    $region14: #{tpu_custom_call.1} parent=1 // pred_check
      %p27 = pneg %p26
    $region15: #{tpu_custom_call.1} parent=1 // pred_check_branch
      %29 = sbr.rel (%p27) target = $region17
    $region16: #{tpu_custom_call.1} parent=1 // pred_region
      %vm30 = vcmask 254976
      %31 = vst.msk [vmem:[#allocation2] sm:$0x3] %vm30, 0.0
      %vm32 = vcmask 1024
      %33 = vst.msk [vmem:[#allocation4] sm:$0x3] %vm32, 0.0
      %34 = vst.msk [vmem:[#allocation3] sm:$0x3] %vm30, -inf
    $region17: #{tpu_custom_call.1} parent=1 // pred_fallthru
      _
    %v35 = vld [vmem:[#allocation5] sm:$0xff]
    %v36 = vld [vmem:[#allocation5 + $0x8] sm:$0xff]
    %v37 = vld [vmem:[%s1] sm:$0x3]
    %v38 = vcvt.s32.f32 %v37
    %v39 = vlaneseq
    %v40 = vshrl.u32 %v39, 7
    %v41 = vsub.s32 0, %v40
    %v42 = vrot.slane %v38, %v41
    %44 = vbcast.lane.b32.xlu0 %v42, 256
    %v45 = vpop.permute.xlu0 %44
    %v46 = vlaneseq
    %v47 = vshrl.u32 %v46, 7
    %v48 = vsub.s32 1, %v47
    %v49 = vrot.slane %v38, %v48
    %51 = vbcast.lane.b32.xlu0 %v49, 256
    %v52 = vpop.permute.xlu0 %51
    %v53 = vld [vmem:[#allocation2] sm:$0x3]
    %v54 = vmul.f32 %v35, %v45
    %v55 = vmul.f32 %v36, %v52
    %vm56 = vcmask 261120
    %v57 = vsel %vm56, %v54, 0.0
    %v58 = vrot.slane %v57, 4
    %v59 = vadd.f32 %v57, %v58
    %v60 = vrot.slane %v59, 2
    %v61 = vadd.f32 %v59, %v60
    %v62 = vrot.slane %v61, 1
    %v63 = vadd.f32 %v61, %v62
    %v64 = vsel %vm56, %v55, 0.0
    %v65 = vrot.slane %v64, 4
    %v66 = vadd.f32 %v64, %v65
    %v67 = vrot.slane %v66, 2
    %v68 = vadd.f32 %v66, %v67
    %v69 = vrot.slane %v68, 1
    %v70 = vadd.f32 %v68, %v69
    %vm73 = vcmask 1041409
    %v74 = vsel %vm73, %v70, %v63
    %v76 = vadd.f32 %v53, %v74
    %vm77 = vcmask 254976
    %78 = vst.msk [vmem:[#allocation2] sm:$0x3] %vm77, %v76
    %v79 = vld [vmem:[#allocation4] sm:$0x3]
    %vm80 = vcmask 58368
    %v81 = vsel %vm80, %v38, 0.0
    %82 = vadd.xlane.f32.xlu0 %v81
    %v83 = vpop.xlane.xlu0 %82
    %v84 = vadd.f32 %v79, %v83
    %vm85 = vcmask 1024
    %86 = vst.msk [vmem:[#allocation4] sm:$0x3] %vm85, %v84
    %vm87 = vcmp.eq.f32.partialorder %v45, 0.0
    %vm88 = vcmp.eq.f32.partialorder %v52, 0.0
    %v89 = vsel %vm87, 1, 0
    %v90 = vsel %vm88, 1, 0
    %vm91 = vcmp.eq.s32.totalorder %v89, 1
    %vm92 = vcmp.eq.s32.totalorder %v90, 1
    %v93 = vsel %vm91, -10000.0, %v35
    %v94 = vsel %vm92, -10000.0, %v36
    %v95 = vld [vmem:[#allocation3] sm:$0x3]
    %v96 = vsel %vm56, %v93, -inf
    %v97 = vrot.slane %v96, 4
    %v98 = vmax.f32 %v96, %v97
    %v99 = vrot.slane %v98, 2
    %v100 = vmax.f32 %v98, %v99
    %v101 = vrot.slane %v100, 1
    %v102 = vmax.f32 %v100, %v101
    %v103 = vsel %vm56, %v94, -inf
    %v104 = vrot.slane %v103, 4
    %v105 = vmax.f32 %v103, %v104
    %v106 = vrot.slane %v105, 2
    %v107 = vmax.f32 %v105, %v106
    %v108 = vrot.slane %v107, 1
    %v109 = vmax.f32 %v107, %v108
    %v112 = vsel %vm73, %v109, %v102
    %v114 = vmax.f32 %v95, %v112
    %115 = vst.msk [vmem:[#allocation3] sm:$0x3] %vm77, %v114
    // Predicated region
    $region18: #{tpu_custom_call.1} parent=1 // pred_check
      %p116 = pneg %p26
    $region19: #{tpu_custom_call.1} parent=1 // pred_check_branch
      %118 = sbr.rel (%p116) target = $region21
    $region20: #{tpu_custom_call.1} parent=1 // pred_region
      %v119 = vld [vmem:[#allocation2] sm:$0x3]
      %v120 = vld [vmem:[#allocation4] sm:$0x3]
      %v121 = vmax.f32 %v120, 1e-09
      %123 = vset.pattern.permute.xlu0 0
      %124 = vperm.xlu0 %123, %v121
      %v125 = vpop.permute.xlu0 %124
      %v127 = vrcp.pop %v125
      %v128 = vmul.f32 %v119, %v127
      %129 = vst.msk [vmem:[#allocation8] sm:$0x3] %vm77, %v128
      %v130 = vld [vmem:[#allocation3] sm:$0x3]
      %132 = vrot.lane.b32.xlu0 %v130, 32
      %v133 = vpop.permute.xlu0 %132
      %vm135 = vcmask 517376
      %136 = vst.msk [vmem:[#allocation8] sm:$0x3] %vm135, %v133
    $region21: #{tpu_custom_call.1} parent=1 // pred_fallthru
      _
    // Predicated region
    $region22: #{tpu_custom_call.1} parent=1 // pred_check
      _
    $region23: #{tpu_custom_call.1} parent=1 // pred_check_branch
      %138 = sbr.rel (0) target = $region25
    $region24: #{tpu_custom_call.1} parent=1 // pred_region
      %s140 = ssub.s32 32, 32
      %141 = vsyncadd [#allocation7], %s140
      %s143 = sshll.u32 [#allocation8], 4
      %s144 = int_to_ptr.vmem [resolvable:$true] %s143
      %146 = dma.vmem_to_hbm [thread:$0]  %s144, 32, %s2, [#allocation7]
    $region25: #{tpu_custom_call.1} parent=1 // pred_fallthru
      _
    // Predicated region
    $region26: #{tpu_custom_call.1} parent=1 // pred_check
      _
    $region27: #{tpu_custom_call.1} parent=1 // pred_check_branch
      %148 = sbr.rel (0) target = $region29
    $region28: #{tpu_custom_call.1} parent=1 // pred_region
      %149 = dma.done [#allocation7], 32
    $region29: #{tpu_custom_call.1} parent=1 // pred_fallthru
      _
    %150 = vsyncpa [#allocation6], 1
    %151 = vsyncpa [#allocation7], 1

</llo_original>
